<compile_context>
chip_gen: v6e
topology: v6e:2x2x1
jax: 0.10.0
libtpu: 0.0.40
codegen_flags: <defaults>
</compile_context>

<pallas_src>
import functools

import jax
import jax.numpy as jnp
import numpy as np
from jax.experimental import pallas as pl
from jax.experimental.pallas import tpu as pltpu


def _encoder_region_kernel(x_ref, w_ref, b_ref, o_ref):
    """One (tile_m, N) output tile: full-K matmul (MXU) + bias + L2-normalize."""
    y = jnp.dot(x_ref[...], w_ref[...], preferred_element_type=jnp.float32)
    y = y + b_ref[...]                                            # fc_region bias
    # l2norm: X / (sqrt(sum(X^2, -1)) + eps)
    norm = jnp.sqrt(jnp.sum(y * y, axis=-1, keepdims=True)) + 1e-8
    o_ref[...] = (y * pl.reciprocal(norm, approx=True)).astype(o_ref.dtype)


@functools.partial(jax.jit, static_argnames=("tm", "matmul_dtype"))
def encoder_region_forward(region_feat, weight_t, bias, *, tm=512, matmul_dtype=None):
    """region_feat: (..., 2048); weight_t: (2048, embed); bias: (embed,).

    matmul_dtype: optionally cast matmul operands (e.g. jnp.bfloat16) — accumulation
    and the l2norm epilogue remain f32.
    """
    lead_shape = region_feat.shape[:-1]
    K = region_feat.shape[-1]
    N = weight_t.shape[-1]
    out_dtype = region_feat.dtype

    x = region_feat.reshape(-1, K)
    M = x.shape[0]

    if matmul_dtype is not None:
        x = x.astype(matmul_dtype)
        weight_t = weight_t.astype(matmul_dtype)

    bias2d = bias.reshape(1, N).astype(jnp.float32)

    if M <= tm:
        # Whole problem in one grid point — everything resident in VMEM.
        tile_m, m_pad, grid = M, M, (1,)
    else:
        m_pad = pl.cdiv(M, tm) * tm
        tile_m, grid = tm, (m_pad // tm,)
        if m_pad != M:
            x = jnp.pad(x, ((0, m_pad - M), (0, 0)))

    out = pl.pallas_call(
        _encoder_region_kernel,
        out_shape=jax.ShapeDtypeStruct((m_pad, N), out_dtype),
        grid_spec=pltpu.PrefetchScalarGridSpec(
            num_scalar_prefetch=0,
            grid=grid,
            in_specs=[
                pl.BlockSpec((tile_m, K), lambda i: (i, 0)),   # x row tile (streamed)
                pl.BlockSpec((K, N), lambda i: (0, 0)),        # weight: resident, DMA'd once
                pl.BlockSpec((1, N), lambda i: (0, 0)),        # bias: resident
            ],
            out_specs=pl.BlockSpec((tile_m, N), lambda i: (i, 0)),
        ),
        compiler_params=pltpu.CompilerParams(
            dimension_semantics=("parallel",),                 # megacore-shard M on v7x
        ),
    )(x, weight_t, bias2d)

    if m_pad != M:
        out = out[:M]
    return out.reshape(*lead_shape, N)


def init_encoder_region_params(key, in_features=2048, embed_size=128):
    """Xavier-uniform weight (as in the PyTorch init_weights), zero bias."""
    r = np.sqrt(6.0) / np.sqrt(in_features + embed_size)
    # Stored already transposed: (in_features, embed_size)
    weight_t = jax.random.uniform(
        key, (in_features, embed_size), jnp.float32, minval=-r, maxval=r
    )
    bias = jnp.zeros((embed_size,), jnp.float32)
    return weight_t, bias


def _reference(region_feat, weight_t, bias):
    y = jnp.einsum("...k,kn->...n", region_feat, weight_t) + bias
    norm = jnp.sqrt(jnp.sum(y * y, axis=-1, keepdims=True)) + 1e-8
    return y / norm


if __name__ == "__main__":
    key = jax.random.PRNGKey(0)
    k_w, k_x1, k_x2 = jax.random.split(key, 3)

    embed_size = 128
    in_features = 2048

    weight_t, bias = init_encoder_region_params(k_w, in_features, embed_size)

    # Case 1: small (B=2, R=8, 2048) region features — single-grid-point fast path, f32.
    feat_small = jax.random.normal(k_x1, (2, 8, in_features), jnp.float32)
    out_small = jax.block_until_ready(encoder_region_forward(feat_small, weight_t, bias))
    ref_small = _reference(feat_small, weight_t, bias)
    np.testing.assert_allclose(
        np.asarray(out_small), np.asarray(ref_small), rtol=1e-3, atol=1e-3
    )
    assert out_small.shape == (2, 8, embed_size)

    # Case 2: non-tile-aligned M (3*200=600 rows) — tiled + padded path, bf16 matmul operands.
    feat_med = jax.random.normal(k_x2, (3, 200, in_features), jnp.float32)
    out_med = jax.block_until_ready(
        encoder_region_forward(
            feat_med, weight_t, bias, tm=256, matmul_dtype=jnp.bfloat16
        )
    )
    ref_med = _reference(feat_med, weight_t, bias)
    np.testing.assert_allclose(
        np.asarray(out_med), np.asarray(ref_med), rtol=3e-2, atol=3e-2
    )
    assert out_med.shape == (3, 200, embed_size)

    print("KERNEL_OK")
</pallas_src>

<mosaic_0001>
module attributes {stable_mosaic.version = 11 : i64} {
  func.func @_encoder_region_kernel(%arg0: i32, %arg1: memref<16x2048xf32, #tpu.memory_space<vmem>>, %arg2: memref<2048x128xf32, #tpu.memory_space<vmem>>, %arg3: memref<1x128xf32, #tpu.memory_space<vmem>>, %arg4: memref<16x128xf32, #tpu.memory_space<vmem>>) attributes {dimension_semantics = [#tpu.dimension_semantics<parallel>], iteration_bounds = array<i64: 1>, scalar_prefetch = 0 : i64, scratch_operands = 0 : i64, tpu.core_type = #tpu.core_type<tc>, window_params = [{transform_indices = @transform_0, window_bounds = array<i64: 16, 2048>}, {pipeline_mode = #tpu.pipeline_mode<synchronous>, transform_indices = @transform_1, window_bounds = array<i64: 2048, 128>}, {pipeline_mode = #tpu.pipeline_mode<synchronous>, transform_indices = @transform_2, window_bounds = array<i64: 1, 128>}, {transform_indices = @transform_3, window_bounds = array<i64: 16, 128>}]} {
    %c0 = arith.constant 0 : index
    %c0_0 = arith.constant 0 : index
    %0 = vector.load %arg1[%c0, %c0_0] : memref<16x2048xf32, #tpu.memory_space<vmem>>, vector<16x2048xf32>
    %c0_1 = arith.constant 0 : index
    %c0_2 = arith.constant 0 : index
    %1 = vector.load %arg2[%c0_1, %c0_2] : memref<2048x128xf32, #tpu.memory_space<vmem>>, vector<2048x128xf32>
    %cst = arith.constant dense<0.000000e+00> : vector<16x128xf32>
    %2 = tpu.matmul %0, %1, %cst {dimension_numbers = #tpu.dot_dimension_numbers<[1], [0], [0], [1], [0, 0, 1, 1], [], []>} : vector<16x2048xf32>, vector<2048x128xf32>, vector<16x128xf32> -> vector<16x128xf32>
    %c0_3 = arith.constant 0 : index
    %c0_4 = arith.constant 0 : index
    %3 = vector.load %arg3[%c0_3, %c0_4] : memref<1x128xf32, #tpu.memory_space<vmem>>, vector<1x128xf32>
    %4 = vector.broadcast %3 : vector<1x128xf32> to vector<16x128xf32>
    %5 = arith.addf %2, %4 : vector<16x128xf32>
    %6 = arith.mulf %5, %5 : vector<16x128xf32>
    %cst_5 = arith.constant dense<0.000000e+00> : vector<16xf32>
    %7 = vector.multi_reduction <add>, %6, %cst_5 [1] : vector<16x128xf32> to vector<16xf32>
    %8 = vector.shape_cast %7 : vector<16xf32> to vector<16x1xf32>
    %9 = math.sqrt %8 : vector<16x1xf32>
    %cst_6 = arith.constant 9.99999993E-9 : f32
    %10 = vector.broadcast %cst_6 : f32 to vector<16x1xf32>
    %11 = arith.addf %9, %10 : vector<16x1xf32>
    %12 = tpu.reciprocal %11 {approx = true} : vector<16x1xf32> -> vector<16x1xf32>
    %13 = vector.broadcast %12 : vector<16x1xf32> to vector<16x128xf32>
    %14 = arith.mulf %5, %13 : vector<16x128xf32>
    %c0_7 = arith.constant 0 : index
    %c0_8 = arith.constant 0 : index
    %15 = vector.load %arg4[%c0_7, %c0_8] : memref<16x128xf32, #tpu.memory_space<vmem>>, vector<16x128xf32>
    tpu.vector_store %arg4[%c0_7, %c0_8], %14 {strides = array<i32>} : memref<16x128xf32, #tpu.memory_space<vmem>>, vector<16x128xf32>,
    return
  }
  func.func @transform_0(%arg0: i32) -> (i32, i32) {
    %c0_i32 = arith.constant 0 : i32
    %c0_i32_0 = arith.constant 0 : i32
    return %arg0, %c0_i32 : i32, i32
  }
  func.func @transform_1(%arg0: i32) -> (i32, i32) {
    %c0_i32 = arith.constant 0 : i32
    %c0_i32_0 = arith.constant 0 : i32
    %c0_i32_1 = arith.constant 0 : i32
    return %c0_i32, %c0_i32_0 : i32, i32
  }
  func.func @transform_2(%arg0: i32) -> (i32, i32) {
    %c0_i32 = arith.constant 0 : i32
    %c0_i32_0 = arith.constant 0 : i32
    %c0_i32_1 = arith.constant 0 : i32
    return %c0_i32, %c0_i32_0 : i32, i32
  }
  func.func @transform_3(%arg0: i32) -> (i32, i32) {
    %c0_i32 = arith.constant 0 : i32
    %c0_i32_0 = arith.constant 0 : i32
    return %arg0, %c0_i32 : i32, i32
  }
}

</mosaic_0001>

<llo_original>
// kernel: encoder_region_forward.1
$region0: #{encoder_region_forward.1}
  #allocation0 [shape = 'u32[]', space=smem, size = 0x4, offset = 0x4, fixed_abs, tag = 'smem constant byte address 0x4 - core index']
  #allocation1 [shape = 'u32[144,128]{1,0:T(1,128)}', space=vmem, size = 0x12000, scoped, tag = 'internal scratch']
  %s0 = inlined_call_operand.hbm [shape: f32[16,2048], index: 0, kind: input, shape index: {}]
  %s1 = inlined_call_operand.hbm [shape: f32[2048,128], index: 1, kind: input, shape index: {}]
  %s2 = inlined_call_operand.vmem [shape: f32[1,128], index: 2, kind: input, shape index: {}]
  %s3 = inlined_call_operand.hbm [shape: f32[16,128], index: 3, kind: output, shape index: {}]
  %s4 = sld [smem:[#allocation0]]
  $region30: #{encoder_region_forward.1} parent=0
    _
  %s6 = ssub.s32 1, %s4
  %s7 = scalar_select 0, %s6, %s4
  $region1: #{encoder_region_forward.1} parent=0
    #allocation2 [shape = 'u8[131072]{0}', space=vmem, size = 0x20000, scoped, tag = 'input window, operand 0, single buffered']
    #allocation3 [shape = 's32[1]{0}', space=sflag, size = 0x4, scoped, tag = 'scoped memory for encoder_region_forward.1']
    #allocation4 [shape = 's32[1]{0}', space=sflag, size = 0x4, scoped, tag = 'scoped memory for encoder_region_forward.1']
    #allocation5 [shape = 'u8[1048576]{0}', space=vmem, size = 0x100000, scoped, tag = 'input window, operand 1, single buffered']
    #allocation6 [shape = 's32[1]{0}', space=sflag, size = 0x4, scoped, tag = 'scoped memory for encoder_region_forward.1']
    #allocation7 [shape = 'u8[8192]{0}', space=vmem, size = 0x2000, scoped, tag = 'output window, operand 0, single buffered']
    %8 = vsyncpa [#allocation3], 0
    %9 = vsyncpa [#allocation6], 0
    %10 = vsyncpa [#allocation4], 0
    // Predicated region
    $region2: #{encoder_region_forward.1} parent=1 // pred_check
      _
    $region3: #{encoder_region_forward.1} parent=1 // pred_check_branch
      %12 = sbr.rel (0) target = $region5
    $region4: #{encoder_region_forward.1} parent=1 // pred_region
      %s14 = ssub.s32 4096, 4096
      %15 = vsyncadd [#allocation3], %s14
      %s16 = sshll.u32 [#allocation2], 4
      %s17 = int_to_ptr.vmem [resolvable:$true] %s16
      %22 = dma.hbm_to_vmem [thread:$0]  %s0, 4096, %s17, [#allocation3], 2048, 2048, 128
    $region5: #{encoder_region_forward.1} parent=1 // pred_fallthru
      _
    // Predicated region
    $region6: #{encoder_region_forward.1} parent=1 // pred_check
      _
    $region7: #{encoder_region_forward.1} parent=1 // pred_check_branch
      %24 = sbr.rel (0) target = $region9
    $region8: #{encoder_region_forward.1} parent=1 // pred_region
      %s26 = ssub.s32 32768, 32768
      %27 = vsyncadd [#allocation6], %s26
      %s28 = sshll.u32 [#allocation5], 4
      %s29 = int_to_ptr.vmem [resolvable:$true] %s28
      %34 = dma.hbm_to_vmem [thread:$0]  %s1, 32768, %s29, [#allocation6], 128, 128, 8
    $region9: #{encoder_region_forward.1} parent=1 // pred_fallthru
      _
    // Predicated region
    $region10: #{encoder_region_forward.1} parent=1 // pred_check
      _
    $region11: #{encoder_region_forward.1} parent=1 // pred_check_branch
      %36 = sbr.rel (0) target = $region13
    $region12: #{encoder_region_forward.1} parent=1 // pred_region
      _
    $region13: #{encoder_region_forward.1} parent=1 // pred_fallthru
      _
    // Predicated region
    $region14: #{encoder_region_forward.1} parent=1 // pred_check
      _
    $region15: #{encoder_region_forward.1} parent=1 // pred_check_branch
      %38 = sbr.rel (0) target = $region17
    $region16: #{encoder_region_forward.1} parent=1 // pred_region
      %39 = dma.done [#allocation3], 4096
    $region17: #{encoder_region_forward.1} parent=1 // pred_fallthru
      _
    // Predicated region
    $region18: #{encoder_region_forward.1} parent=1 // pred_check
      _
    $region19: #{encoder_region_forward.1} parent=1 // pred_check_branch
      %41 = sbr.rel (0) target = $region21
    $region20: #{encoder_region_forward.1} parent=1 // pred_region
      %42 = dma.done [#allocation6], 32768
    $region21: #{encoder_region_forward.1} parent=1 // pred_fallthru
      _
    %v43 = vld [vmem:[#allocation2] sm:$0xff]
    %v44 = vld [vmem:[#allocation2 + $0x8] sm:$0xff]
    %v45 = vld [vmem:[#allocation2 + $0x10] sm:$0xff]
    %v46 = vld [vmem:[#allocation2 + $0x18] sm:$0xff]
    %v47 = vld [vmem:[#allocation2 + $0x20] sm:$0xff]
    %v48 = vld [vmem:[#allocation2 + $0x28] sm:$0xff]
    %v49 = vld [vmem:[#allocation2 + $0x30] sm:$0xff]
    %v50 = vld [vmem:[#allocation2 + $0x38] sm:$0xff]
    %v51 = vld [vmem:[#allocation2 + $0x40] sm:$0xff]
    %v52 = vld [vmem:[#allocation2 + $0x48] sm:$0xff]
    %v53 = vld [vmem:[#allocation2 + $0x50] sm:$0xff]
    %v54 = vld [vmem:[#allocation2 + $0x58] sm:$0xff]
    %v55 = vld [vmem:[#allocation2 + $0x60] sm:$0xff]
    %v56 = vld [vmem:[#allocation2 + $0x68] sm:$0xff]
    %v57 = vld [vmem:[#allocation2 + $0x70] sm:$0xff]
    %v58 = vld [vmem:[#allocation2 + $0x78] sm:$0xff]
    %v59 = vld [vmem:[#allocation2 + $0x80] sm:$0xff]
    %v60 = vld [vmem:[#allocation2 + $0x88] sm:$0xff]
    %v61 = vld [vmem:[#allocation2 + $0x90] sm:$0xff]
    %v62 = vld [vmem:[#allocation2 + $0x98] sm:$0xff]
    %v63 = vld [vmem:[#allocation2 + $0xa0] sm:$0xff]
    %v64 = vld [vmem:[#allocation2 + $0xa8] sm:$0xff]
    %v65 = vld [vmem:[#allocation2 + $0xb0] sm:$0xff]
    %v66 = vld [vmem:[#allocation2 + $0xb8] sm:$0xff]
    %v67 = vld [vmem:[#allocation2 + $0xc0] sm:$0xff]
    %v68 = vld [vmem:[#allocation2 + $0xc8] sm:$0xff]
    %v69 = vld [vmem:[#allocation2 + $0xd0] sm:$0xff]
    %v70 = vld [vmem:[#allocation2 + $0xd8] sm:$0xff]
    %v71 = vld [vmem:[#allocation2 + $0xe0] sm:$0xff]
    %v72 = vld [vmem:[#allocation2 + $0xe8] sm:$0xff]
    %v73 = vld [vmem:[#allocation2 + $0xf0] sm:$0xff]
    %v74 = vld [vmem:[#allocation2 + $0xf8] sm:$0xff]
    %v75 = vld [vmem:[#allocation5] sm:$0xff]
    %v76 = vld [vmem:[#allocation5 + $0x8] sm:$0xff]
    %v77 = vld [vmem:[#allocation5 + $0x10] sm:$0xff]
    %v78 = vld [vmem:[#allocation5 + $0x18] sm:$0xff]
    %v79 = vld [vmem:[#allocation5 + $0x20] sm:$0xff]
    %v80 = vld [vmem:[#allocation5 + $0x28] sm:$0xff]
    %v81 = vld [vmem:[#allocation5 + $0x30] sm:$0xff]
    %v82 = vld [vmem:[#allocation5 + $0x38] sm:$0xff]
    %v83 = vld [vmem:[#allocation5 + $0x40] sm:$0xff]
    %v84 = vld [vmem:[#allocation5 + $0x48] sm:$0xff]
    %v85 = vld [vmem:[#allocation5 + $0x50] sm:$0xff]
    %v86 = vld [vmem:[#allocation5 + $0x58] sm:$0xff]
    %v87 = vld [vmem:[#allocation5 + $0x60] sm:$0xff]
    %v88 = vld [vmem:[#allocation5 + $0x68] sm:$0xff]
    %v89 = vld [vmem:[#allocation5 + $0x70] sm:$0xff]
    %v90 = vld [vmem:[#allocation5 + $0x78] sm:$0xff]
    %v91 = vld [vmem:[#allocation5 + $0x80] sm:$0xff]
    %v92 = vld [vmem:[#allocation5 + $0x88] sm:$0xff]
    %v93 = vld [vmem:[#allocation5 + $0x90] sm:$0xff]
    %v94 = vld [vmem:[#allocation5 + $0x98] sm:$0xff]
    %v95 = vld [vmem:[#allocation5 + $0xa0] sm:$0xff]
    %v96 = vld [vmem:[#allocation5 + $0xa8] sm:$0xff]
    %v97 = vld [vmem:[#allocation5 + $0xb0] sm:$0xff]
    %v98 = vld [vmem:[#allocation5 + $0xb8] sm:$0xff]
    %v99 = vld [vmem:[#allocation5 + $0xc0] sm:$0xff]
    %v100 = vld [vmem:[#allocation5 + $0xc8] sm:$0xff]
    %v101 = vld [vmem:[#allocation5 + $0xd0] sm:$0xff]
    %v102 = vld [vmem:[#allocation5 + $0xd8] sm:$0xff]
    %v103 = vld [vmem:[#allocation5 + $0xe0] sm:$0xff]
    %v104 = vld [vmem:[#allocation5 + $0xe8] sm:$0xff]
    %v105 = vld [vmem:[#allocation5 + $0xf0] sm:$0xff]
    %v106 = vld [vmem:[#allocation5 + $0xf8] sm:$0xff]
    %v107 = vld [vmem:[#allocation5 + $0x100] sm:$0xff]
    %v108 = vld [vmem:[#allocation5 + $0x108] sm:$0xff]
    %v109 = vld [vmem:[#allocation5 + $0x110] sm:$0xff]
    %v110 = vld [vmem:[#allocation5 + $0x118] sm:$0xff]
    %v111 = vld [vmem:[#allocation5 + $0x120] sm:$0xff]
    %v112 = vld [vmem:[#allocation5 + $0x128] sm:$0xff]
    %v113 = vld [vmem:[#allocation5 + $0x130] sm:$0xff]
    %v114 = vld [vmem:[#allocation5 + $0x138] sm:$0xff]
    %v115 = vld [vmem:[#allocation5 + $0x140] sm:$0xff]
    %v116 = vld [vmem:[#allocation5 + $0x148] sm:$0xff]
    %v117 = vld [vmem:[#allocation5 + $0x150] sm:$0xff]
    %v118 = vld [vmem:[#allocation5 + $0x158] sm:$0xff]
    %v119 = vld [vmem:[#allocation5 + $0x160] sm:$0xff]
    %v120 = vld [vmem:[#allocation5 + $0x168] sm:$0xff]
    %v121 = vld [vmem:[#allocation5 + $0x170] sm:$0xff]
    %v122 = vld [vmem:[#allocation5 + $0x178] sm:$0xff]
    %v123 = vld [vmem:[#allocation5 + $0x180] sm:$0xff]
    %v124 = vld [vmem:[#allocation5 + $0x188] sm:$0xff]
    %v125 = vld [vmem:[#allocation5 + $0x190] sm:$0xff]
    %v126 = vld [vmem:[#allocation5 + $0x198] sm:$0xff]
    %v127 = vld [vmem:[#allocation5 + $0x1a0] sm:$0xff]
    %v128 = vld [vmem:[#allocation5 + $0x1a8] sm:$0xff]
    %v129 = vld [vmem:[#allocation5 + $0x1b0] sm:$0xff]
    %v130 = vld [vmem:[#allocation5 + $0x1b8] sm:$0xff]
    %v131 = vld [vmem:[#allocation5 + $0x1c0] sm:$0xff]
    %v132 = vld [vmem:[#allocation5 + $0x1c8] sm:$0xff]
    %v133 = vld [vmem:[#allocation5 + $0x1d0] sm:$0xff]
    %v134 = vld [vmem:[#allocation5 + $0x1d8] sm:$0xff]
    %v135 = vld [vmem:[#allocation5 + $0x1e0] sm:$0xff]
    %v136 = vld [vmem:[#allocation5 + $0x1e8] sm:$0xff]
    %v137 = vld [vmem:[#allocation5 + $0x1f0] sm:$0xff]
    %v138 = vld [vmem:[#allocation5 + $0x1f8] sm:$0xff]
    %v139 = vld [vmem:[#allocation5 + $0x200] sm:$0xff]
    %v140 = vld [vmem:[#allocation5 + $0x208] sm:$0xff]
    %v141 = vld [vmem:[#allocation5 + $0x210] sm:$0xff]
    %v142 = vld [vmem:[#allocation5 + $0x218] sm:$0xff]
    %v143 = vld [vmem:[#allocation5 + $0x220] sm:$0xff]
    %v144 = vld [vmem:[#allocation5 + $0x228] sm:$0xff]
    %v145 = vld [vmem:[#allocation5 + $0x230] sm:$0xff]
    %v146 = vld [vmem:[#allocation5 + $0x238] sm:$0xff]
    %v147 = vld [vmem:[#allocation5 + $0x240] sm:$0xff]
    %v148 = vld [vmem:[#allocation5 + $0x248] sm:$0xff]
    %v149 = vld [vmem:[#allocation5 + $0x250] sm:$0xff]
    %v150 = vld [vmem:[#allocation5 + $0x258] sm:$0xff]
    %v151 = vld [vmem:[#allocation5 + $0x260] sm:$0xff]
    %v152 = vld [vmem:[#allocation5 + $0x268] sm:$0xff]
    %v153 = vld [vmem:[#allocation5 + $0x270] sm:$0xff]
    %v154 = vld [vmem:[#allocation5 + $0x278] sm:$0xff]
    %v155 = vld [vmem:[#allocation5 + $0x280] sm:$0xff]
    %v156 = vld [vmem:[#allocation5 + $0x288] sm:$0xff]
    %v157 = vld [vmem:[#allocation5 + $0x290] sm:$0xff]
    %v158 = vld [vmem:[#allocation5 + $0x298] sm:$0xff]
    %v159 = vld [vmem:[#allocation5 + $0x2a0] sm:$0xff]
    %v160 = vld [vmem:[#allocation5 + $0x2a8] sm:$0xff]
    %v161 = vld [vmem:[#allocation5 + $0x2b0] sm:$0xff]
    %v162 = vld [vmem:[#allocation5 + $0x2b8] sm:$0xff]
    %v163 = vld [vmem:[#allocation5 + $0x2c0] sm:$0xff]
    %v164 = vld [vmem:[#allocation5 + $0x2c8] sm:$0xff]
    %v165 = vld [vmem:[#allocation5 + $0x2d0] sm:$0xff]
    %v166 = vld [vmem:[#allocation5 + $0x2d8] sm:$0xff]
    %v167 = vld [vmem:[#allocation5 + $0x2e0] sm:$0xff]
    %v168 = vld [vmem:[#allocation5 + $0x2e8] sm:$0xff]
    %v169 = vld [vmem:[#allocation5 + $0x2f0] sm:$0xff]
    %v170 = vld [vmem:[#allocation5 + $0x2f8] sm:$0xff]
    %v171 = vld [vmem:[#allocation5 + $0x300] sm:$0xff]
    %v172 = vld [vmem:[#allocation5 + $0x308] sm:$0xff]
    %v173 = vld [vmem:[#allocation5 + $0x310] sm:$0xff]
    %v174 = vld [vmem:[#allocation5 + $0x318] sm:$0xff]
    %v175 = vld [vmem:[#allocation5 + $0x320] sm:$0xff]
    %v176 = vld [vmem:[#allocation5 + $0x328] sm:$0xff]
    %v177 = vld [vmem:[#allocation5 + $0x330] sm:$0xff]
    %v178 = vld [vmem:[#allocation5 + $0x338] sm:$0xff]
    %v179 = vld [vmem:[#allocation5 + $0x340] sm:$0xff]
    %v180 = vld [vmem:[#allocation5 + $0x348] sm:$0xff]
    %v181 = vld [vmem:[#allocation5 + $0x350] sm:$0xff]
    %v182 = vld [vmem:[#allocation5 + $0x358] sm:$0xff]
    %v183 = vld [vmem:[#allocation5 + $0x360] sm:$0xff]
    %v184 = vld [vmem:[#allocation5 + $0x368] sm:$0xff]
    %v185 = vld [vmem:[#allocation5 + $0x370] sm:$0xff]
    %v186 = vld [vmem:[#allocation5 + $0x378] sm:$0xff]
    %v187 = vld [vmem:[#allocation5 + $0x380] sm:$0xff]
    %v188 = vld [vmem:[#allocation5 + $0x388] sm:$0xff]
    %v189 = vld [vmem:[#allocation5 + $0x390] sm:$0xff]
    %v190 = vld [vmem:[#allocation5 + $0x398] sm:$0xff]
    %v191 = vld [vmem:[#allocation5 + $0x3a0] sm:$0xff]
    %v192 = vld [vmem:[#allocation5 + $0x3a8] sm:$0xff]
    %v193 = vld [vmem:[#allocation5 + $0x3b0] sm:$0xff]
    %v194 = vld [vmem:[#allocation5 + $0x3b8] sm:$0xff]
    %v195 = vld [vmem:[#allocation5 + $0x3c0] sm:$0xff]
    %v196 = vld [vmem:[#allocation5 + $0x3c8] sm:$0xff]
    %v197 = vld [vmem:[#allocation5 + $0x3d0] sm:$0xff]
    %v198 = vld [vmem:[#allocation5 + $0x3d8] sm:$0xff]
    %v199 = vld [vmem:[#allocation5 + $0x3e0] sm:$0xff]
    %v200 = vld [vmem:[#allocation5 + $0x3e8] sm:$0xff]
    %v201 = vld [vmem:[#allocation5 + $0x3f0] sm:$0xff]
    %v202 = vld [vmem:[#allocation5 + $0x3f8] sm:$0xff]
    %v203 = vld [vmem:[#allocation5 + $0x400] sm:$0xff]
    %v204 = vld [vmem:[#allocation5 + $0x408] sm:$0xff]
    %v205 = vld [vmem:[#allocation5 + $0x410] sm:$0xff]
    %v206 = vld [vmem:[#allocation5 + $0x418] sm:$0xff]
    %v207 = vld [vmem:[#allocation5 + $0x420] sm:$0xff]
    %v208 = vld [vmem:[#allocation5 + $0x428] sm:$0xff]
    %v209 = vld [vmem:[#allocation5 + $0x430] sm:$0xff]
    %v210 = vld [vmem:[#allocation5 + $0x438] sm:$0xff]
    %v211 = vld [vmem:[#allocation5 + $0x440] sm:$0xff]
    %v212 = vld [vmem:[#allocation5 + $0x448] sm:$0xff]
    %v213 = vld [vmem:[#allocation5 + $0x450] sm:$0xff]
    %v214 = vld [vmem:[#allocation5 + $0x458] sm:$0xff]
    %v215 = vld [vmem:[#allocation5 + $0x460] sm:$0xff]
    %v216 = vld [vmem:[#allocation5 + $0x468] sm:$0xff]
    %v217 = vld [vmem:[#allocation5 + $0x470] sm:$0xff]
    %v218 = vld [vmem:[#allocation5 + $0x478] sm:$0xff]
    %v219 = vld [vmem:[#allocation5 + $0x480] sm:$0xff]
    %v220 = vld [vmem:[#allocation5 + $0x488] sm:$0xff]
    %v221 = vld [vmem:[#allocation5 + $0x490] sm:$0xff]
    %v222 = vld [vmem:[#allocation5 + $0x498] sm:$0xff]
    %v223 = vld [vmem:[#allocation5 + $0x4a0] sm:$0xff]
    %v224 = vld [vmem:[#allocation5 + $0x4a8] sm:$0xff]
    %v225 = vld [vmem:[#allocation5 + $0x4b0] sm:$0xff]
    %v226 = vld [vmem:[#allocation5 + $0x4b8] sm:$0xff]
    %v227 = vld [vmem:[#allocation5 + $0x4c0] sm:$0xff]
    %v228 = vld [vmem:[#allocation5 + $0x4c8] sm:$0xff]
    %v229 = vld [vmem:[#allocation5 + $0x4d0] sm:$0xff]
    %v230 = vld [vmem:[#allocation5 + $0x4d8] sm:$0xff]
    %v231 = vld [vmem:[#allocation5 + $0x4e0] sm:$0xff]
    %v232 = vld [vmem:[#allocation5 + $0x4e8] sm:$0xff]
    %v233 = vld [vmem:[#allocation5 + $0x4f0] sm:$0xff]
    %v234 = vld [vmem:[#allocation5 + $0x4f8] sm:$0xff]
    %v235 = vld [vmem:[#allocation5 + $0x500] sm:$0xff]
    %v236 = vld [vmem:[#allocation5 + $0x508] sm:$0xff]
    %v237 = vld [vmem:[#allocation5 + $0x510] sm:$0xff]
    %v238 = vld [vmem:[#allocation5 + $0x518] sm:$0xff]
    %v239 = vld [vmem:[#allocation5 + $0x520] sm:$0xff]
    %v240 = vld [vmem:[#allocation5 + $0x528] sm:$0xff]
    %v241 = vld [vmem:[#allocation5 + $0x530] sm:$0xff]
    %v242 = vld [vmem:[#allocation5 + $0x538] sm:$0xff]
    %v243 = vld [vmem:[#allocation5 + $0x540] sm:$0xff]
    %v244 = vld [vmem:[#allocation5 + $0x548] sm:$0xff]
    %v245 = vld [vmem:[#allocation5 + $0x550] sm:$0xff]
    %v246 = vld [vmem:[#allocation5 + $0x558] sm:$0xff]
    %v247 = vld [vmem:[#allocation5 + $0x560] sm:$0xff]
    %v248 = vld [vmem:[#allocation5 + $0x568] sm:$0xff]
    %v249 = vld [vmem:[#allocation5 + $0x570] sm:$0xff]
    %v250 = vld [vmem:[#allocation5 + $0x578] sm:$0xff]
    %v251 = vld [vmem:[#allocation5 + $0x580] sm:$0xff]
    %v252 = vld [vmem:[#allocation5 + $0x588] sm:$0xff]
    %v253 = vld [vmem:[#allocation5 + $0x590] sm:$0xff]
    %v254 = vld [vmem:[#allocation5 + $0x598] sm:$0xff]
    %v255 = vld [vmem:[#allocation5 + $0x5a0] sm:$0xff]
    %v256 = vld [vmem:[#allocation5 + $0x5a8] sm:$0xff]
    %v257 = vld [vmem:[#allocation5 + $0x5b0] sm:$0xff]
    %v258 = vld [vmem:[#allocation5 + $0x5b8] sm:$0xff]
    %v259 = vld [vmem:[#allocation5 + $0x5c0] sm:$0xff]
    %v260 = vld [vmem:[#allocation5 + $0x5c8] sm:$0xff]
    %v261 = vld [vmem:[#allocation5 + $0x5d0] sm:$0xff]
    %v262 = vld [vmem:[#allocation5 + $0x5d8] sm:$0xff]
    %v263 = vld [vmem:[#allocation5 + $0x5e0] sm:$0xff]
    %v264 = vld [vmem:[#allocation5 + $0x5e8] sm:$0xff]
    %v265 = vld [vmem:[#allocation5 + $0x5f0] sm:$0xff]
    %v266 = vld [vmem:[#allocation5 + $0x5f8] sm:$0xff]
    %v267 = vld [vmem:[#allocation5 + $0x600] sm:$0xff]
    %v268 = vld [vmem:[#allocation5 + $0x608] sm:$0xff]
    %v269 = vld [vmem:[#allocation5 + $0x610] sm:$0xff]
    %v270 = vld [vmem:[#allocation5 + $0x618] sm:$0xff]
    %v271 = vld [vmem:[#allocation5 + $0x620] sm:$0xff]
    %v272 = vld [vmem:[#allocation5 + $0x628] sm:$0xff]
    %v273 = vld [vmem:[#allocation5 + $0x630] sm:$0xff]
    %v274 = vld [vmem:[#allocation5 + $0x638] sm:$0xff]
    %v275 = vld [vmem:[#allocation5 + $0x640] sm:$0xff]
    %v276 = vld [vmem:[#allocation5 + $0x648] sm:$0xff]
    %v277 = vld [vmem:[#allocation5 + $0x650] sm:$0xff]
    %v278 = vld [vmem:[#allocation5 + $0x658] sm:$0xff]
    %v279 = vld [vmem:[#allocation5 + $0x660] sm:$0xff]
    %v280 = vld [vmem:[#allocation5 + $0x668] sm:$0xff]
    %v281 = vld [vmem:[#allocation5 + $0x670] sm:$0xff]
    %v282 = vld [vmem:[#allocation5 + $0x678] sm:$0xff]
    %v283 = vld [vmem:[#allocation5 + $0x680] sm:$0xff]
    %v284 = vld [vmem:[#allocation5 + $0x688] sm:$0xff]
    %v285 = vld [vmem:[#allocation5 + $0x690] sm:$0xff]
    %v286 = vld [vmem:[#allocation5 + $0x698] sm:$0xff]
    %v287 = vld [vmem:[#allocation5 + $0x6a0] sm:$0xff]
    %v288 = vld [vmem:[#allocation5 + $0x6a8] sm:$0xff]
    %v289 = vld [vmem:[#allocation5 + $0x6b0] sm:$0xff]
    %v290 = vld [vmem:[#allocation5 + $0x6b8] sm:$0xff]
    %v291 = vld [vmem:[#allocation5 + $0x6c0] sm:$0xff]
    %v292 = vld [vmem:[#allocation5 + $0x6c8] sm:$0xff]
    %v293 = vld [vmem:[#allocation5 + $0x6d0] sm:$0xff]
    %v294 = vld [vmem:[#allocation5 + $0x6d8] sm:$0xff]
    %v295 = vld [vmem:[#allocation5 + $0x6e0] sm:$0xff]
    %v296 = vld [vmem:[#allocation5 + $0x6e8] sm:$0xff]
    %v297 = vld [vmem:[#allocation5 + $0x6f0] sm:$0xff]
    %v298 = vld [vmem:[#allocation5 + $0x6f8] sm:$0xff]
    %v299 = vld [vmem:[#allocation5 + $0x700] sm:$0xff]
    %v300 = vld [vmem:[#allocation5 + $0x708] sm:$0xff]
    %v301 = vld [vmem:[#allocation5 + $0x710] sm:$0xff]
    %v302 = vld [vmem:[#allocation5 + $0x718] sm:$0xff]
    %v303 = vld [vmem:[#allocation5 + $0x720] sm:$0xff]
    %v304 = vld [vmem:[#allocation5 + $0x728] sm:$0xff]
    %v305 = vld [vmem:[#allocation5 + $0x730] sm:$0xff]
    %v306 = vld [vmem:[#allocation5 + $0x738] sm:$0xff]
    %v307 = vld [vmem:[#allocation5 + $0x740] sm:$0xff]
    %v308 = vld [vmem:[#allocation5 + $0x748] sm:$0xff]
    %v309 = vld [vmem:[#allocation5 + $0x750] sm:$0xff]
    %v310 = vld [vmem:[#allocation5 + $0x758] sm:$0xff]
    %v311 = vld [vmem:[#allocation5 + $0x760] sm:$0xff]
    %v312 = vld [vmem:[#allocation5 + $0x768] sm:$0xff]
    %v313 = vld [vmem:[#allocation5 + $0x770] sm:$0xff]
    %v314 = vld [vmem:[#allocation5 + $0x778] sm:$0xff]
    %v315 = vld [vmem:[#allocation5 + $0x780] sm:$0xff]
    %v316 = vld [vmem:[#allocation5 + $0x788] sm:$0xff]
    %v317 = vld [vmem:[#allocation5 + $0x790] sm:$0xff]
    %v318 = vld [vmem:[#allocation5 + $0x798] sm:$0xff]
    %v319 = vld [vmem:[#allocation5 + $0x7a0] sm:$0xff]
    %v320 = vld [vmem:[#allocation5 + $0x7a8] sm:$0xff]
    %v321 = vld [vmem:[#allocation5 + $0x7b0] sm:$0xff]
    %v322 = vld [vmem:[#allocation5 + $0x7b8] sm:$0xff]
    %v323 = vld [vmem:[#allocation5 + $0x7c0] sm:$0xff]
    %v324 = vld [vmem:[#allocation5 + $0x7c8] sm:$0xff]
    %v325 = vld [vmem:[#allocation5 + $0x7d0] sm:$0xff]
    %v326 = vld [vmem:[#allocation5 + $0x7d8] sm:$0xff]
    %v327 = vld [vmem:[#allocation5 + $0x7e0] sm:$0xff]
    %v328 = vld [vmem:[#allocation5 + $0x7e8] sm:$0xff]
    %v329 = vld [vmem:[#allocation5 + $0x7f0] sm:$0xff]
    %v330 = vld [vmem:[#allocation5 + $0x7f8] sm:$0xff]
    %v331 = vld [vmem:[%s2] sm:$0x1]
    %v333 = vlaneseq
    %v334 = vshrl.u32 %v333, 7
    %v335 = vsub.s32 0, %v334
    %v336 = vrot.slane %v331, %v335
    %338 = vmatprep.subr.mxu0 0.0
    %339 = vmatpush1.msra.mxu0 %v90
    %340 = vmatprep.subr.mxu0 0.0
    %341 = vmatpush1.msra.mxu0 %v89
    %342 = vmatprep.subr.mxu0 0.0
    %343 = vmatpush1.msra.mxu0 %v88
    %344 = vmatprep.subr.mxu0 0.0
    %345 = vmatpush1.msra.mxu0 %v87
    %346 = vmatprep.subr.mxu0 0.0
    %347 = vmatpush1.msra.mxu0 %v86
    %348 = vmatprep.subr.mxu0 0.0
    %349 = vmatpush1.msra.mxu0 %v85
    %350 = vmatprep.subr.mxu0 0.0
    %351 = vmatpush1.msra.mxu0 %v84
    %352 = vmatprep.subr.mxu0 0.0
    %353 = vmatpush1.msra.mxu0 %v83
    %354 = vmatprep.subr.mxu0 0.0
    %355 = vmatpush1.msra.mxu0 %v82
    %356 = vmatprep.subr.mxu0 0.0
    %357 = vmatpush1.msra.mxu0 %v81
    %358 = vmatprep.subr.mxu0 0.0
    %359 = vmatpush1.msra.mxu0 %v80
    %360 = vmatprep.subr.mxu0 0.0
    %361 = vmatpush1.msra.mxu0 %v79
    %362 = vmatprep.subr.mxu0 0.0
    %363 = vmatpush1.msra.mxu0 %v78
    %364 = vmatprep.subr.mxu0 0.0
    %365 = vmatpush1.msra.mxu0 %v77
    %366 = vmatprep.subr.mxu0 0.0
    %367 = vmatpush1.msra.mxu0 %v76
    %368 = vmatprep.subr.mxu0 0.0
    %369 = vmatpush1.msra.mxu0 %v75
    %370 = vmatprep.subr.mxu0 0.0
    %371 = vmatpush2.msra.mxu0 %v106
    %372 = vmatprep.subr.mxu0 0.0
    %373 = vmatpush2.msra.mxu0 %v105
    %374 = vmatprep.subr.mxu0 0.0
    %375 = vmatpush2.msra.mxu0 %v104
    %376 = vmatprep.subr.mxu0 0.0
    %377 = vmatpush2.msra.mxu0 %v103
    %378 = vmatprep.subr.mxu0 0.0
    %379 = vmatpush2.msra.mxu0 %v102
    %380 = vmatprep.subr.mxu0 0.0
    %381 = vmatpush2.msra.mxu0 %v101
    %382 = vmatprep.subr.mxu0 0.0
    %383 = vmatpush2.msra.mxu0 %v100
    %384 = vmatprep.subr.mxu0 0.0
    %385 = vmatpush2.msra.mxu0 %v99
    %386 = vmatprep.subr.mxu0 0.0
    %387 = vmatpush2.msra.mxu0 %v98
    %388 = vmatprep.subr.mxu0 0.0
    %389 = vmatpush2.msra.mxu0 %v97
    %390 = vmatprep.subr.mxu0 0.0
    %391 = vmatpush2.msra.mxu0 %v96
    %392 = vmatprep.subr.mxu0 0.0
    %393 = vmatpush2.msra.mxu0 %v95
    %394 = vmatprep.subr.mxu0 0.0
    %395 = vmatpush2.msra.mxu0 %v94
    %396 = vmatprep.subr.mxu0 0.0
    %397 = vmatpush2.msra.mxu0 %v93
    %398 = vmatprep.subr.mxu0 0.0
    %399 = vmatpush2.msra.mxu0 %v92
    %400 = vmatprep.subr.mxu0 0.0
    %401 = vmatpush2.msra.mxu0 %v91
    %402 = vmatprep.mubr.f32.mxu0 %v44
    %403 = vmatmul.mubr.f32.gmra.mxu0 %v43
    %v404 = vpop.f32.mrf.mxu0
    %v405 = vadd.f32 %v336, %v404
    %v406 = vpop.f32.mrf.mxu0
    %407 = vmatprep.mubr.f32.mxu0 %v60
    %408 = vmatmul.mubr.f32.gmra.mxu0 %v59
    %v409 = vpop.f32.mrf.mxu0
    %v410 = vadd.f32 %v336, %v409
    %v411 = vpop.f32.mrf.mxu0
    %412 = vdwg.mxu0
    %413 = vmatprep.subr.mxu0 0.0
    %414 = vmatpush1.msra.mxu0 %v122
    %415 = vmatprep.subr.mxu0 0.0
    %416 = vmatpush1.msra.mxu0 %v121
    %417 = vmatprep.subr.mxu0 0.0
    %418 = vmatpush1.msra.mxu0 %v120
    %419 = vmatprep.subr.mxu0 0.0
    %420 = vmatpush1.msra.mxu0 %v119
    %421 = vmatprep.subr.mxu0 0.0
    %422 = vmatpush1.msra.mxu0 %v118
    %423 = vmatprep.subr.mxu0 0.0
    %424 = vmatpush1.msra.mxu0 %v117
    %425 = vmatprep.subr.mxu0 0.0
    %426 = vmatpush1.msra.mxu0 %v116
    %427 = vmatprep.subr.mxu0 0.0
    %428 = vmatpush1.msra.mxu0 %v115
    %429 = vmatprep.subr.mxu0 0.0
    %430 = vmatpush1.msra.mxu0 %v114
    %431 = vmatprep.subr.mxu0 0.0
    %432 = vmatpush1.msra.mxu0 %v113
    %433 = vmatprep.subr.mxu0 0.0
    %434 = vmatpush1.msra.mxu0 %v112
    %435 = vmatprep.subr.mxu0 0.0
    %436 = vmatpush1.msra.mxu0 %v111
    %437 = vmatprep.subr.mxu0 0.0
    %438 = vmatpush1.msra.mxu0 %v110
    %439 = vmatprep.subr.mxu0 0.0
    %440 = vmatpush1.msra.mxu0 %v109
    %441 = vmatprep.subr.mxu0 0.0
    %442 = vmatpush1.msra.mxu0 %v108
    %443 = vmatprep.subr.mxu0 0.0
    %444 = vmatpush1.msra.mxu0 %v107
    %445 = vmatprep.subr.mxu0 0.0
    %446 = vmatpush2.msra.mxu0 %v138
    %447 = vmatprep.subr.mxu0 0.0
    %448 = vmatpush2.msra.mxu0 %v137
    %449 = vmatprep.subr.mxu0 0.0
    %450 = vmatpush2.msra.mxu0 %v136
    %451 = vmatprep.subr.mxu0 0.0
    %452 = vmatpush2.msra.mxu0 %v135
    %453 = vmatprep.subr.mxu0 0.0
    %454 = vmatpush2.msra.mxu0 %v134
    %455 = vmatprep.subr.mxu0 0.0
    %456 = vmatpush2.msra.mxu0 %v133
    %457 = vmatprep.subr.mxu0 0.0
    %458 = vmatpush2.msra.mxu0 %v132
    %459 = vmatprep.subr.mxu0 0.0
    %460 = vmatpush2.msra.mxu0 %v131
    %461 = vmatprep.subr.mxu0 0.0
    %462 = vmatpush2.msra.mxu0 %v130
    %463 = vmatprep.subr.mxu0 0.0
    %464 = vmatpush2.msra.mxu0 %v129
    %465 = vmatprep.subr.mxu0 0.0
    %466 = vmatpush2.msra.mxu0 %v128
    %467 = vmatprep.subr.mxu0 0.0
    %468 = vmatpush2.msra.mxu0 %v127
    %469 = vmatprep.subr.mxu0 0.0
    %470 = vmatpush2.msra.mxu0 %v126
    %471 = vmatprep.subr.mxu0 0.0
    %472 = vmatpush2.msra.mxu0 %v125
    %473 = vmatprep.subr.mxu0 0.0
    %474 = vmatpush2.msra.mxu0 %v124
    %475 = vmatprep.subr.mxu0 0.0
    %476 = vmatpush2.msra.mxu0 %v123
    %477 = vmatprep.mubr.f32.mxu0 %v46
    %478 = vmatmul.mubr.f32.gmra.mxu0 %v45
    %v479 = vpop.f32.mrf.mxu0
    %v480 = vadd.f32 %v405, %v479
    %v481 = vpop.f32.mrf.mxu0
    %482 = vmatprep.mubr.f32.mxu0 %v62
    %483 = vmatmul.mubr.f32.gmra.mxu0 %v61
    %v484 = vpop.f32.mrf.mxu0
    %v485 = vadd.f32 %v410, %v484
    %v486 = vpop.f32.mrf.mxu0
    %487 = vdwg.mxu0
    %488 = vmatprep.subr.mxu0 0.0
    %489 = vmatpush1.msra.mxu0 %v154
    %490 = vmatprep.subr.mxu0 0.0
    %491 = vmatpush1.msra.mxu0 %v153
    %492 = vmatprep.subr.mxu0 0.0
    %493 = vmatpush1.msra.mxu0 %v152
    %494 = vmatprep.subr.mxu0 0.0
    %495 = vmatpush1.msra.mxu0 %v151
    %496 = vmatprep.subr.mxu0 0.0
    %497 = vmatpush1.msra.mxu0 %v150
    %498 = vmatprep.subr.mxu0 0.0
    %499 = vmatpush1.msra.mxu0 %v149
    %500 = vmatprep.subr.mxu0 0.0
    %501 = vmatpush1.msra.mxu0 %v148
    %502 = vmatprep.subr.mxu0 0.0
    %503 = vmatpush1.msra.mxu0 %v147
    %504 = vmatprep.subr.mxu0 0.0
    %505 = vmatpush1.msra.mxu0 %v146
    %506 = vmatprep.subr.mxu0 0.0
    %507 = vmatpush1.msra.mxu0 %v145
    %508 = vmatprep.subr.mxu0 0.0
    %509 = vmatpush1.msra.mxu0 %v144
    %510 = vmatprep.subr.mxu0 0.0
    %511 = vmatpush1.msra.mxu0 %v143
    %512 = vmatprep.subr.mxu0 0.0
    %513 = vmatpush1.msra.mxu0 %v142
    %514 = vmatprep.subr.mxu0 0.0
    %515 = vmatpush1.msra.mxu0 %v141
    %516 = vmatprep.subr.mxu0 0.0
    %517 = vmatpush1.msra.mxu0 %v140
    %518 = vmatprep.subr.mxu0 0.0
    %519 = vmatpush1.msra.mxu0 %v139
    %520 = vmatprep.subr.mxu0 0.0
    %521 = vmatpush2.msra.mxu0 %v170
    %522 = vmatprep.subr.mxu0 0.0
    %523 = vmatpush2.msra.mxu0 %v169
    %524 = vmatprep.subr.mxu0 0.0
    %525 = vmatpush2.msra.mxu0 %v168
    %526 = vmatprep.subr.mxu0 0.0
    %527 = vmatpush2.msra.mxu0 %v167
    %528 = vmatprep.subr.mxu0 0.0
    %529 = vmatpush2.msra.mxu0 %v166
    %530 = vmatprep.subr.mxu0 0.0
    %531 = vmatpush2.msra.mxu0 %v165
    %532 = vmatprep.subr.mxu0 0.0
    %533 = vmatpush2.msra.mxu0 %v164
    %534 = vmatprep.subr.mxu0 0.0
    %535 = vmatpush2.msra.mxu0 %v163
    %536 = vmatprep.subr.mxu0 0.0
    %537 = vmatpush2.msra.mxu0 %v162
    %538 = vmatprep.subr.mxu0 0.0
    %539 = vmatpush2.msra.mxu0 %v161
    %540 = vmatprep.subr.mxu0 0.0
    %541 = vmatpush2.msra.mxu0 %v160
    %542 = vmatprep.subr.mxu0 0.0
    %543 = vmatpush2.msra.mxu0 %v159
    %544 = vmatprep.subr.mxu0 0.0
    %545 = vmatpush2.msra.mxu0 %v158
    %546 = vmatprep.subr.mxu0 0.0
    %547 = vmatpush2.msra.mxu0 %v157
    %548 = vmatprep.subr.mxu0 0.0
    %549 = vmatpush2.msra.mxu0 %v156
    %550 = vmatprep.subr.mxu0 0.0
    %551 = vmatpush2.msra.mxu0 %v155
    %552 = vmatprep.mubr.f32.mxu0 %v48
    %553 = vmatmul.mubr.f32.gmra.mxu0 %v47
    %v554 = vpop.f32.mrf.mxu0
    %v555 = vadd.f32 %v480, %v554
    %v556 = vpop.f32.mrf.mxu0
    %557 = vmatprep.mubr.f32.mxu0 %v64
    %558 = vmatmul.mubr.f32.gmra.mxu0 %v63
    %v559 = vpop.f32.mrf.mxu0
    %v560 = vadd.f32 %v485, %v559
    %v561 = vpop.f32.mrf.mxu0
    %562 = vdwg.mxu0
    %563 = vmatprep.subr.mxu0 0.0
    %564 = vmatpush1.msra.mxu0 %v186
    %565 = vmatprep.subr.mxu0 0.0
    %566 = vmatpush1.msra.mxu0 %v185
    %567 = vmatprep.subr.mxu0 0.0
    %568 = vmatpush1.msra.mxu0 %v184
    %569 = vmatprep.subr.mxu0 0.0
    %570 = vmatpush1.msra.mxu0 %v183
    %571 = vmatprep.subr.mxu0 0.0
    %572 = vmatpush1.msra.mxu0 %v182
    %573 = vmatprep.subr.mxu0 0.0
    %574 = vmatpush1.msra.mxu0 %v181
    %575 = vmatprep.subr.mxu0 0.0
    %576 = vmatpush1.msra.mxu0 %v180
    %577 = vmatprep.subr.mxu0 0.0
    %578 = vmatpush1.msra.mxu0 %v179
    %579 = vmatprep.subr.mxu0 0.0
    %580 = vmatpush1.msra.mxu0 %v178
    %581 = vmatprep.subr.mxu0 0.0
    %582 = vmatpush1.msra.mxu0 %v177
    %583 = vmatprep.subr.mxu0 0.0
    %584 = vmatpush1.msra.mxu0 %v176
    %585 = vmatprep.subr.mxu0 0.0
    %586 = vmatpush1.msra.mxu0 %v175
    %587 = vmatprep.subr.mxu0 0.0
    %588 = vmatpush1.msra.mxu0 %v174
    %589 = vmatprep.subr.mxu0 0.0
    %590 = vmatpush1.msra.mxu0 %v173
    %591 = vmatprep.subr.mxu0 0.0
    %592 = vmatpush1.msra.mxu0 %v172
    %593 = vmatprep.subr.mxu0 0.0
    %594 = vmatpush1.msra.mxu0 %v171
    %595 = vmatprep.subr.mxu0 0.0
    %596 = vmatpush2.msra.mxu0 %v202
    %597 = vmatprep.subr.mxu0 0.0
    %598 = vmatpush2.msra.mxu0 %v201
    %599 = vmatprep.subr.mxu0 0.0
    %600 = vmatpush2.msra.mxu0 %v200
    %601 = vmatprep.subr.mxu0 0.0
    %602 = vmatpush2.msra.mxu0 %v199
    %603 = vmatprep.subr.mxu0 0.0
    %604 = vmatpush2.msra.mxu0 %v198
    %605 = vmatprep.subr.mxu0 0.0
    %606 = vmatpush2.msra.mxu0 %v197
    %607 = vmatprep.subr.mxu0 0.0
    %608 = vmatpush2.msra.mxu0 %v196
    %609 = vmatprep.subr.mxu0 0.0
    %610 = vmatpush2.msra.mxu0 %v195
    %611 = vmatprep.subr.mxu0 0.0
    %612 = vmatpush2.msra.mxu0 %v194
    %613 = vmatprep.subr.mxu0 0.0
    %614 = vmatpush2.msra.mxu0 %v193
    %615 = vmatprep.subr.mxu0 0.0
    %616 = vmatpush2.msra.mxu0 %v192
    %617 = vmatprep.subr.mxu0 0.0
    %618 = vmatpush2.msra.mxu0 %v191
    %619 = vmatprep.subr.mxu0 0.0
    %620 = vmatpush2.msra.mxu0 %v190
    %621 = vmatprep.subr.mxu0 0.0
    %622 = vmatpush2.msra.mxu0 %v189
    %623 = vmatprep.subr.mxu0 0.0
    %624 = vmatpush2.msra.mxu0 %v188
    %625 = vmatprep.subr.mxu0 0.0
    %626 = vmatpush2.msra.mxu0 %v187
    %627 = vmatprep.mubr.f32.mxu0 %v50
    %628 = vmatmul.mubr.f32.gmra.mxu0 %v49
    %v629 = vpop.f32.mrf.mxu0
    %v630 = vadd.f32 %v555, %v629
    %v631 = vpop.f32.mrf.mxu0
    %632 = vmatprep.mubr.f32.mxu0 %v66
    %633 = vmatmul.mubr.f32.gmra.mxu0 %v65
    %v634 = vpop.f32.mrf.mxu0
    %v635 = vadd.f32 %v560, %v634
    %v636 = vpop.f32.mrf.mxu0
    %637 = vdwg.mxu0
    %638 = vmatprep.subr.mxu0 0.0
    %639 = vmatpush1.msra.mxu0 %v218
    %640 = vmatprep.subr.mxu0 0.0
    %641 = vmatpush1.msra.mxu0 %v217
    %642 = vmatprep.subr.mxu0 0.0
    %643 = vmatpush1.msra.mxu0 %v216
    %644 = vmatprep.subr.mxu0 0.0
    %645 = vmatpush1.msra.mxu0 %v215
    %646 = vmatprep.subr.mxu0 0.0
    %647 = vmatpush1.msra.mxu0 %v214
    %648 = vmatprep.subr.mxu0 0.0
    %649 = vmatpush1.msra.mxu0 %v213
    %650 = vmatprep.subr.mxu0 0.0
    %651 = vmatpush1.msra.mxu0 %v212
    %652 = vmatprep.subr.mxu0 0.0
    %653 = vmatpush1.msra.mxu0 %v211
    %654 = vmatprep.subr.mxu0 0.0
    %655 = vmatpush1.msra.mxu0 %v210
    %656 = vmatprep.subr.mxu0 0.0
    %657 = vmatpush1.msra.mxu0 %v209
    %658 = vmatprep.subr.mxu0 0.0
    %659 = vmatpush1.msra.mxu0 %v208
    %660 = vmatprep.subr.mxu0 0.0
    %661 = vmatpush1.msra.mxu0 %v207
    %662 = vmatprep.subr.mxu0 0.0
    %663 = vmatpush1.msra.mxu0 %v206
    %664 = vmatprep.subr.mxu0 0.0
    %665 = vmatpush1.msra.mxu0 %v205
    %666 = vmatprep.subr.mxu0 0.0
    %667 = vmatpush1.msra.mxu0 %v204
    %668 = vmatprep.subr.mxu0 0.0
    %669 = vmatpush1.msra.mxu0 %v203
    %670 = vmatprep.subr.mxu0 0.0
    %671 = vmatpush2.msra.mxu0 %v234
    %672 = vmatprep.subr.mxu0 0.0
    %673 = vmatpush2.msra.mxu0 %v233
    %674 = vmatprep.subr.mxu0 0.0
    %675 = vmatpush2.msra.mxu0 %v232
    %676 = vmatprep.subr.mxu0 0.0
    %677 = vmatpush2.msra.mxu0 %v231
    %678 = vmatprep.subr.mxu0 0.0
    %679 = vmatpush2.msra.mxu0 %v230
    %680 = vmatprep.subr.mxu0 0.0
    %681 = vmatpush2.msra.mxu0 %v229
    %682 = vmatprep.subr.mxu0 0.0
    %683 = vmatpush2.msra.mxu0 %v228
    %684 = vmatprep.subr.mxu0 0.0
    %685 = vmatpush2.msra.mxu0 %v227
    %686 = vmatprep.subr.mxu0 0.0
    %687 = vmatpush2.msra.mxu0 %v226
    %688 = vmatprep.subr.mxu0 0.0
    %689 = vmatpush2.msra.mxu0 %v225
    %690 = vmatprep.subr.mxu0 0.0
    %691 = vmatpush2.msra.mxu0 %v224
    %692 = vmatprep.subr.mxu0 0.0
    %693 = vmatpush2.msra.mxu0 %v223
    %694 = vmatprep.subr.mxu0 0.0
    %695 = vmatpush2.msra.mxu0 %v222
    %696 = vmatprep.subr.mxu0 0.0
    %697 = vmatpush2.msra.mxu0 %v221
    %698 = vmatprep.subr.mxu0 0.0
    %699 = vmatpush2.msra.mxu0 %v220
    %700 = vmatprep.subr.mxu0 0.0
    %701 = vmatpush2.msra.mxu0 %v219
    %702 = vmatprep.mubr.f32.mxu0 %v52
    %703 = vmatmul.mubr.f32.gmra.mxu0 %v51
    %v704 = vpop.f32.mrf.mxu0
    %v705 = vadd.f32 %v630, %v704
    %v706 = vpop.f32.mrf.mxu0
    %707 = vmatprep.mubr.f32.mxu0 %v68
    %708 = vmatmul.mubr.f32.gmra.mxu0 %v67
    %v709 = vpop.f32.mrf.mxu0
    %v710 = vadd.f32 %v635, %v709
    %v711 = vpop.f32.mrf.mxu0
    %712 = vdwg.mxu0
    %713 = vmatprep.subr.mxu0 0.0
    %714 = vmatpush1.msra.mxu0 %v250
    %715 = vmatprep.subr.mxu0 0.0
    %716 = vmatpush1.msra.mxu0 %v249
    %717 = vmatprep.subr.mxu0 0.0
    %718 = vmatpush1.msra.mxu0 %v248
    %719 = vmatprep.subr.mxu0 0.0
    %720 = vmatpush1.msra.mxu0 %v247
    %721 = vmatprep.subr.mxu0 0.0
    %722 = vmatpush1.msra.mxu0 %v246
    %723 = vmatprep.subr.mxu0 0.0
    %724 = vmatpush1.msra.mxu0 %v245
    %725 = vmatprep.subr.mxu0 0.0
    %726 = vmatpush1.msra.mxu0 %v244
    %727 = vmatprep.subr.mxu0 0.0
    %728 = vmatpush1.msra.mxu0 %v243
    %729 = vmatprep.subr.mxu0 0.0
    %730 = vmatpush1.msra.mxu0 %v242
    %731 = vmatprep.subr.mxu0 0.0
    %732 = vmatpush1.msra.mxu0 %v241
    %733 = vmatprep.subr.mxu0 0.0
    %734 = vmatpush1.msra.mxu0 %v240
    %735 = vmatprep.subr.mxu0 0.0
    %736 = vmatpush1.msra.mxu0 %v239
    %737 = vmatprep.subr.mxu0 0.0
    %738 = vmatpush1.msra.mxu0 %v238
    %739 = vmatprep.subr.mxu0 0.0
    %740 = vmatpush1.msra.mxu0 %v237
    %741 = vmatprep.subr.mxu0 0.0
    %742 = vmatpush1.msra.mxu0 %v236
    %743 = vmatprep.subr.mxu0 0.0
    %744 = vmatpush1.msra.mxu0 %v235
    %745 = vmatprep.subr.mxu0 0.0
    %746 = vmatpush2.msra.mxu0 %v266
    %747 = vmatprep.subr.mxu0 0.0
    %748 = vmatpush2.msra.mxu0 %v265
    %749 = vmatprep.subr.mxu0 0.0
    %750 = vmatpush2.msra.mxu0 %v264
    %751 = vmatprep.subr.mxu0 0.0
    %752 = vmatpush2.msra.mxu0 %v263
    %753 = vmatprep.subr.mxu0 0.0
    %754 = vmatpush2.msra.mxu0 %v262
    %755 = vmatprep.subr.mxu0 0.0
    %756 = vmatpush2.msra.mxu0 %v261
    %757 = vmatprep.subr.mxu0 0.0
    %758 = vmatpush2.msra.mxu0 %v260
    %759 = vmatprep.subr.mxu0 0.0
    %760 = vmatpush2.msra.mxu0 %v259
    %761 = vmatprep.subr.mxu0 0.0
    %762 = vmatpush2.msra.mxu0 %v258
    %763 = vmatprep.subr.mxu0 0.0
    %764 = vmatpush2.msra.mxu0 %v257
    %765 = vmatprep.subr.mxu0 0.0
    %766 = vmatpush2.msra.mxu0 %v256
    %767 = vmatprep.subr.mxu0 0.0
    %768 = vmatpush2.msra.mxu0 %v255
    %769 = vmatprep.subr.mxu0 0.0
    %770 = vmatpush2.msra.mxu0 %v254
    %771 = vmatprep.subr.mxu0 0.0
    %772 = vmatpush2.msra.mxu0 %v253
    %773 = vmatprep.subr.mxu0 0.0
    %774 = vmatpush2.msra.mxu0 %v252
    %775 = vmatprep.subr.mxu0 0.0
    %776 = vmatpush2.msra.mxu0 %v251
    %777 = vmatprep.mubr.f32.mxu0 %v54
    %778 = vmatmul.mubr.f32.gmra.mxu0 %v53
    %v779 = vpop.f32.mrf.mxu0
    %v780 = vadd.f32 %v705, %v779
    %v781 = vpop.f32.mrf.mxu0
    %782 = vmatprep.mubr.f32.mxu0 %v70
    %783 = vmatmul.mubr.f32.gmra.mxu0 %v69
    %v784 = vpop.f32.mrf.mxu0
    %v785 = vadd.f32 %v710, %v784
    %v786 = vpop.f32.mrf.mxu0
    %787 = vdwg.mxu0
    %788 = vmatprep.subr.mxu0 0.0
    %789 = vmatpush1.msra.mxu0 %v282
    %790 = vmatprep.subr.mxu0 0.0
    %791 = vmatpush1.msra.mxu0 %v281
    %792 = vmatprep.subr.mxu0 0.0
    %793 = vmatpush1.msra.mxu0 %v280
    %794 = vmatprep.subr.mxu0 0.0
    %795 = vmatpush1.msra.mxu0 %v279
    %796 = vmatprep.subr.mxu0 0.0
    %797 = vmatpush1.msra.mxu0 %v278
    %798 = vmatprep.subr.mxu0 0.0
    %799 = vmatpush1.msra.mxu0 %v277
    %800 = vmatprep.subr.mxu0 0.0
    %801 = vmatpush1.msra.mxu0 %v276
    %802 = vmatprep.subr.mxu0 0.0
    %803 = vmatpush1.msra.mxu0 %v275
    %804 = vmatprep.subr.mxu0 0.0
    %805 = vmatpush1.msra.mxu0 %v274
    %806 = vmatprep.subr.mxu0 0.0
    %807 = vmatpush1.msra.mxu0 %v273
    %808 = vmatprep.subr.mxu0 0.0
    %809 = vmatpush1.msra.mxu0 %v272
    %810 = vmatprep.subr.mxu0 0.0
    %811 = vmatpush1.msra.mxu0 %v271
    %812 = vmatprep.subr.mxu0 0.0
    %813 = vmatpush1.msra.mxu0 %v270
    %814 = vmatprep.subr.mxu0 0.0
    %815 = vmatpush1.msra.mxu0 %v269
    %816 = vmatprep.subr.mxu0 0.0
    %817 = vmatpush1.msra.mxu0 %v268
    %818 = vmatprep.subr.mxu0 0.0
    %819 = vmatpush1.msra.mxu0 %v267
    %820 = vmatprep.subr.mxu0 0.0
    %821 = vmatpush2.msra.mxu0 %v298
    %822 = vmatprep.subr.mxu0 0.0
    %823 = vmatpush2.msra.mxu0 %v297
    %824 = vmatprep.subr.mxu0 0.0
    %825 = vmatpush2.msra.mxu0 %v296
    %826 = vmatprep.subr.mxu0 0.0
    %827 = vmatpush2.msra.mxu0 %v295
    %828 = vmatprep.subr.mxu0 0.0
    %829 = vmatpush2.msra.mxu0 %v294
    %830 = vmatprep.subr.mxu0 0.0
    %831 = vmatpush2.msra.mxu0 %v293
    %832 = vmatprep.subr.mxu0 0.0
    %833 = vmatpush2.msra.mxu0 %v292
    %834 = vmatprep.subr.mxu0 0.0
    %835 = vmatpush2.msra.mxu0 %v291
    %836 = vmatprep.subr.mxu0 0.0
    %837 = vmatpush2.msra.mxu0 %v290
    %838 = vmatprep.subr.mxu0 0.0
    %839 = vmatpush2.msra.mxu0 %v289
    %840 = vmatprep.subr.mxu0 0.0
    %841 = vmatpush2.msra.mxu0 %v288
    %842 = vmatprep.subr.mxu0 0.0
    %843 = vmatpush2.msra.mxu0 %v287
    %844 = vmatprep.subr.mxu0 0.0
    %845 = vmatpush2.msra.mxu0 %v286
    %846 = vmatprep.subr.mxu0 0.0
    %847 = vmatpush2.msra.mxu0 %v285
    %848 = vmatprep.subr.mxu0 0.0
    %849 = vmatpush2.msra.mxu0 %v284
    %850 = vmatprep.subr.mxu0 0.0
    %851 = vmatpush2.msra.mxu0 %v283
    %852 = vmatprep.mubr.f32.mxu0 %v56
    %853 = vmatmul.mubr.f32.gmra.mxu0 %v55
    %v854 = vpop.f32.mrf.mxu0
    %v855 = vadd.f32 %v780, %v854
    %v856 = vpop.f32.mrf.mxu0
    %857 = vmatprep.mubr.f32.mxu0 %v72
    %858 = vmatmul.mubr.f32.gmra.mxu0 %v71
    %v859 = vpop.f32.mrf.mxu0
    %v860 = vadd.f32 %v785, %v859
    %v861 = vpop.f32.mrf.mxu0
    %862 = vdwg.mxu0
    %863 = vmatprep.subr.mxu0 0.0
    %864 = vmatpush1.msra.mxu0 %v314
    %865 = vmatprep.subr.mxu0 0.0
    %866 = vmatpush1.msra.mxu0 %v313
    %867 = vmatprep.subr.mxu0 0.0
    %868 = vmatpush1.msra.mxu0 %v312
    %869 = vmatprep.subr.mxu0 0.0
    %870 = vmatpush1.msra.mxu0 %v311
    %871 = vmatprep.subr.mxu0 0.0
    %872 = vmatpush1.msra.mxu0 %v310
    %873 = vmatprep.subr.mxu0 0.0
    %874 = vmatpush1.msra.mxu0 %v309
    %875 = vmatprep.subr.mxu0 0.0
    %876 = vmatpush1.msra.mxu0 %v308
    %877 = vmatprep.subr.mxu0 0.0
    %878 = vmatpush1.msra.mxu0 %v307
    %879 = vmatprep.subr.mxu0 0.0
    %880 = vmatpush1.msra.mxu0 %v306
    %881 = vmatprep.subr.mxu0 0.0
    %882 = vmatpush1.msra.mxu0 %v305
    %883 = vmatprep.subr.mxu0 0.0
    %884 = vmatpush1.msra.mxu0 %v304
    %885 = vmatprep.subr.mxu0 0.0
    %886 = vmatpush1.msra.mxu0 %v303
    %887 = vmatprep.subr.mxu0 0.0
    %888 = vmatpush1.msra.mxu0 %v302
    %889 = vmatprep.subr.mxu0 0.0
    %890 = vmatpush1.msra.mxu0 %v301
    %891 = vmatprep.subr.mxu0 0.0
    %892 = vmatpush1.msra.mxu0 %v300
    %893 = vmatprep.subr.mxu0 0.0
    %894 = vmatpush1.msra.mxu0 %v299
    %895 = vmatprep.subr.mxu0 0.0
    %896 = vmatpush2.msra.mxu0 %v330
    %897 = vmatprep.subr.mxu0 0.0
    %898 = vmatpush2.msra.mxu0 %v329
    %899 = vmatprep.subr.mxu0 0.0
    %900 = vmatpush2.msra.mxu0 %v328
    %901 = vmatprep.subr.mxu0 0.0
    %902 = vmatpush2.msra.mxu0 %v327
    %903 = vmatprep.subr.mxu0 0.0
    %904 = vmatpush2.msra.mxu0 %v326
    %905 = vmatprep.subr.mxu0 0.0
    %906 = vmatpush2.msra.mxu0 %v325
    %907 = vmatprep.subr.mxu0 0.0
    %908 = vmatpush2.msra.mxu0 %v324
    %909 = vmatprep.subr.mxu0 0.0
    %910 = vmatpush2.msra.mxu0 %v323
    %911 = vmatprep.subr.mxu0 0.0
    %912 = vmatpush2.msra.mxu0 %v322
    %913 = vmatprep.subr.mxu0 0.0
    %914 = vmatpush2.msra.mxu0 %v321
    %915 = vmatprep.subr.mxu0 0.0
    %916 = vmatpush2.msra.mxu0 %v320
    %917 = vmatprep.subr.mxu0 0.0
    %918 = vmatpush2.msra.mxu0 %v319
    %919 = vmatprep.subr.mxu0 0.0
    %920 = vmatpush2.msra.mxu0 %v318
    %921 = vmatprep.subr.mxu0 0.0
    %922 = vmatpush2.msra.mxu0 %v317
    %923 = vmatprep.subr.mxu0 0.0
    %924 = vmatpush2.msra.mxu0 %v316
    %925 = vmatprep.subr.mxu0 0.0
    %926 = vmatpush2.msra.mxu0 %v315
    %927 = vmatprep.mubr.f32.mxu0 %v58
    %928 = vmatmul.mubr.f32.gmra.mxu0 %v57
    %v929 = vpop.f32.mrf.mxu0
    %v930 = vadd.f32 %v855, %v929
    %v931 = vpop.f32.mrf.mxu0
    %932 = vmatprep.mubr.f32.mxu0 %v74
    %933 = vmatmul.mubr.f32.gmra.mxu0 %v73
    %v934 = vpop.f32.mrf.mxu0
    %v935 = vadd.f32 %v860, %v934
    %v936 = vpop.f32.mrf.mxu0
    %937 = vdwg.mxu0
    %v938 = vmul.f32 %v930, %v930
    %v939 = vmul.f32 %v935, %v935
    %940 = vadd.xlane.f32.xlu0 %v938
    %v941 = vpop.xlane.xlu0 %940
    %942 = vadd.xlane.f32.xlu0 %v939
    %v943 = vpop.xlane.xlu0 %942
    %v944 = vrsqrt.pop %v941
    %v945 = vmul.f32 %v941, %v944
    %vm946 = vcmp.eq.f32.partialorder %v941, inf
    %v947 = vsel %vm946, %v941, %v945
    %vm948 = vcmp.eq.f32.partialorder %v941, 0.0
    %v949 = vand.u32 %v941, 2147483648
    %v950 = vsel %vm948, %v949, %v947
    %v951 = vrsqrt.pop %v943
    %v952 = vmul.f32 %v943, %v951
    %vm953 = vcmp.eq.f32.partialorder %v943, inf
    %v954 = vsel %vm953, %v943, %v952
    %vm955 = vcmp.eq.f32.partialorder %v943, 0.0
    %v956 = vand.u32 %v943, 2147483648
    %v957 = vsel %vm955, %v956, %v954
    %v958 = vadd.f32 %v950, 1e-08
    %v959 = vadd.f32 %v957, 1e-08
    %v960 = vrcp.pop %v958
    %v961 = vrcp.pop %v959
    %v962 = vmul.f32 %v930, %v960
    %v963 = vmul.f32 %v935, %v961
    %964 = vst [vmem:[#allocation7] sm:$0xff] %v962
    %965 = vst [vmem:[#allocation7 + $0x8] sm:$0xff] %v963
    // Predicated region
    $region22: #{encoder_region_forward.1} parent=1 // pred_check
      _
    $region23: #{encoder_region_forward.1} parent=1 // pred_check_branch
      %967 = sbr.rel (0) target = $region25
    $region24: #{encoder_region_forward.1} parent=1 // pred_region
      %s969 = ssub.s32 256, 256
      %970 = vsyncadd [#allocation4], %s969
      %s971 = sshll.u32 [#allocation7], 4
      %s972 = int_to_ptr.vmem [resolvable:$true] %s971
      %977 = dma.vmem_to_hbm [thread:$0]  %s972, 256, %s3, [#allocation4], 128, 128, 8
    $region25: #{encoder_region_forward.1} parent=1 // pred_fallthru
      _
    // Predicated region
    $region26: #{encoder_region_forward.1} parent=1 // pred_check
      _
    $region27: #{encoder_region_forward.1} parent=1 // pred_check_branch
      %979 = sbr.rel (0) target = $region29
    $region28: #{encoder_region_forward.1} parent=1 // pred_region
      %980 = dma.done [#allocation4], 256
    $region29: #{encoder_region_forward.1} parent=1 // pred_fallthru
      _
    %981 = vsyncpa [#allocation3], 1
    %982 = vsyncpa [#allocation6], 1
    %983 = vsyncpa [#allocation4], 1

</llo_original>
